<compile_context>
chip_gen: v7x
topology: tpu7x:2x2x1
jax: 0.10.0
libtpu: 0.0.40
codegen_flags: <defaults>
</compile_context>

<pallas_src>
import functools

import jax
import jax.numpy as jnp
from jax.experimental import pallas as pl
from jax.experimental.pallas import tpu as pltpu

_NEG_PAD = -1.0e30   # padding sentinel, below any realistic logit
_LANES = 128
_BIG = 2 ** 30


# --------------------------------------------------------------------------- #
# Fast kernel: hierarchical top-k with dynamic single-row suppression/repair.  #
# --------------------------------------------------------------------------- #
def _topk_kernel_hier(cls_ref, vals_ref, idxs_ref, w_ref, *, k):
    """cls_ref : (1, 128, R) logits block, element n at (n // R, n % R)
    vals_ref: (1, 1, 128) f32 top-k logits (lanes >= k keep the pad sentinel)
    idxs_ref: (1, 1, 128) i32 top-k flat spatial indices
    w_ref   : (128, R)    f32 VMEM working copy (winners are knocked out)."""
    G, R = w_ref.shape

    w_ref[...] = cls_ref[0].astype(jnp.float32)
    w0 = w_ref[...]

    g_iota = jax.lax.broadcasted_iota(jnp.int32, (G, 1), 0)          # (128, 1)
    r_iota_row = jax.lax.broadcasted_iota(jnp.int32, (1, R), 1)      # (1, R)
    r_iota_full = jax.lax.broadcasted_iota(jnp.int32, (G, R), 1)     # fold only
    k_iota = jax.lax.broadcasted_iota(jnp.int32, (1, _LANES), 1)     # (1, 128)
    big = jnp.int32(_BIG)

    # One O(N) fold: per-group max and its lowest in-group position.
    grp_max = jnp.max(w0, axis=1, keepdims=True)                                 # (128,1)
    grp_arg = jnp.min(jnp.where(w0 == grp_max, r_iota_full, big),
                      axis=1, keepdims=True)                                     # (128,1)

    def body(step, carry):
        grp_max, grp_arg, pv, pi = carry
        # O(128): pick the global winner from the per-group candidates,
        # tie-break = lowest original flat index (matches lax.top_k).
        m = jnp.max(grp_max)
        flat_cand = grp_arg + g_iota * R                     # unique per group
        sel = jnp.min(jnp.where(grp_max == m, flat_cand, big))
        onehot = flat_cand == sel                            # winning group (128,1)
        sel_g = jnp.min(jnp.where(onehot, g_iota, big))      # group id
        sel_r = jnp.min(jnp.where(onehot, grp_arg, big))     # in-group position

        pv = jnp.where(k_iota == step, m, pv)
        pi = jnp.where(k_iota == step, sel, pi)

        # O(R): knock the winner out of its group's row and rebuild that group's
        # candidate from the single affected row only.
        row = w_ref[pl.ds(sel_g, 1), :]                      # (1, R)
        row = jnp.where(r_iota_row == sel_r, -jnp.inf, row)
        w_ref[pl.ds(sel_g, 1), :] = row
        new_v = jnp.max(row)
        new_r = jnp.min(jnp.where(row == new_v, r_iota_row, big))
        grp_max = jnp.where(onehot, new_v, grp_max)
        grp_arg = jnp.where(onehot, new_r, grp_arg)
        return grp_max, grp_arg, pv, pi

    init = (grp_max, grp_arg,
            jnp.full((1, _LANES), _NEG_PAD, jnp.float32),
            jnp.zeros((1, _LANES), jnp.int32))
    _, _, pv, pi = jax.lax.fori_loop(0, k, body, init, unroll=2)

    vals_ref[0] = pv
    idxs_ref[0] = pi


# --------------------------------------------------------------------------- #
# Portable kernel: per-lane candidates + one-hot masked-reduce repair.         #
# (No data-dependent ref indexing, no slab carry, no per-step slab store.)     #
# --------------------------------------------------------------------------- #
def _topk_kernel_safe(cls_ref, vals_ref, idxs_ref, *, k):
    """cls_ref : (1, R, 128) logits block, element n at (n // 128, n % 128)."""
    rows, lanes = cls_ref.shape[1], cls_ref.shape[2]
    w = cls_ref[0].astype(jnp.float32)                                 # (R, 128), read-only

    row_i = jax.lax.broadcasted_iota(jnp.int32, (rows, lanes), 0)      # loop-invariant
    lane_i = jax.lax.broadcasted_iota(jnp.int32, (1, lanes), 1)
    big = jnp.int32(_BIG)

    # One O(N) fold: per-lane max and its lowest row.
    lane_max = jnp.max(w, axis=0, keepdims=True)                       # (1, 128)
    lane_row = jnp.min(jnp.where(w == lane_max, row_i, big),
                       axis=0, keepdims=True)                          # (1, 128)

    def body(step, carry):
        lane_max, lane_row, pv, pi = carry
        # O(128): global winner from the per-lane candidates (lowest-index ties).
        m = jnp.max(lane_max)
        flat_cand = lane_row * lanes + lane_i                          # unique per lane
        sel = jnp.min(jnp.where(lane_max == m, flat_cand, big))
        onehot = flat_cand == sel                                      # winning lane
        win_row = jnp.min(jnp.where(onehot, lane_row, big))

        pv = jnp.where(lane_i == step, m, pv)
        pi = jnp.where(lane_i == step, sel, pi)

        # Repair the winning lane's candidate with a one-hot masked reduce over
        # the read-only slab.  Per-lane consumption is monotone in (value desc,
        # row asc), so "still available" == (v < m) | (v == m & row > win_row).
        avail = (w < m) | ((w == m) & (row_i > win_row))
        cand = jnp.where(onehot & avail, w, -jnp.inf)
        new_v = jnp.max(cand)
        new_r = jnp.min(jnp.where(cand == new_v, row_i, big))
        lane_max = jnp.where(onehot, new_v, lane_max)
        lane_row = jnp.where(onehot, new_r, lane_row)
        return lane_max, lane_row, pv, pi

    init = (lane_max, lane_row,
            jnp.full((1, lanes), _NEG_PAD, jnp.float32),
            jnp.zeros((1, lanes), jnp.int32))
    _, _, pv, pi = jax.lax.fori_loop(0, k, body, init)

    vals_ref[0] = pv
    idxs_ref[0] = pi


# --------------------------------------------------------------------------- #
# pallas_call wrapper for the top-k stage.                                     #
# --------------------------------------------------------------------------- #
def _topk_pallas(logits, k, *, hier):
    """Top-k (largest, lowest-index ties) over raw logits.  logits: (B, N)."""
    B, N = logits.shape
    assert k <= _LANES, "lane-dense top-k output assumes topk <= 128"
    R = pl.cdiv(N, _LANES)
    n_pad = R * _LANES
    x = logits
    if n_pad != N:  # dead for real heads (64x96x96 -> N % 128 == 0); pads in src dtype
        x = jnp.pad(x, ((0, 0), (0, n_pad - N)), constant_values=_NEG_PAD)

    # VMEM budget: double-buffered input block + working/temporary f32 planes.
    slab_f32 = R * _LANES * 4
    in_bytes = R * _LANES * x.dtype.itemsize
    vmem_limit = int(min(96 * 2 ** 20, max(16 * 2 ** 20, 2 * in_bytes + 10 * slab_f32)))

    if hier:
        x = x.reshape(B, _LANES, R)          # element n -> (n // R, n % R)
        kernel = functools.partial(_topk_kernel_hier, k=k)
        in_spec = pl.BlockSpec((1, _LANES, R), lambda b: (b, 0, 0))
        scratch = [pltpu.VMEM((_LANES, R), jnp.float32)]
    else:
        x = x.reshape(B, R, _LANES)          # element n -> (n // 128, n % 128)
        kernel = functools.partial(_topk_kernel_safe, k=k)
        in_spec = pl.BlockSpec((1, R, _LANES), lambda b: (b, 0, 0))
        scratch = []

    vals, idxs = pl.pallas_call(
        kernel,
        out_shape=(jax.ShapeDtypeStruct((B, 1, _LANES), jnp.float32),
                   jax.ShapeDtypeStruct((B, 1, _LANES), jnp.int32)),
        grid_spec=pltpu.PrefetchScalarGridSpec(
            num_scalar_prefetch=0,
            grid=(B,),
            in_specs=[in_spec],
            out_specs=[pl.BlockSpec((1, 1, _LANES), lambda b: (b, 0, 0)),
                       pl.BlockSpec((1, 1, _LANES), lambda b: (b, 0, 0))],
            scratch_shapes=scratch),
        compiler_params=pltpu.CompilerParams(
            dimension_semantics=("parallel",),   # megacore / multi-TC over batch
            vmem_limit_bytes=vmem_limit),
    )(x)
    return vals[:, 0, :k], idxs[:, 0, :k]


_TOPK_IMPL = None


def _select_topk_impl():
    """One-time probe: use the hierarchical kernel if Mosaic lowers its
    data-dependent row indexing correctly, else the portable kernel."""
    global _TOPK_IMPL
    if _TOPK_IMPL is None:
        try:
            probe = jax.random.normal(jax.random.PRNGKey(123), (2, 640), jnp.float32)
            v, i = _topk_pallas(probe, 60, hier=True)
            rv, ri = jax.lax.top_k(probe, 60)
            ok = bool(jnp.array_equal(v, rv)) and bool(jnp.array_equal(i, ri))
            _TOPK_IMPL = "hier" if ok else "safe"
        except Exception:
            _TOPK_IMPL = "safe"
    return _TOPK_IMPL


# --------------------------------------------------------------------------- #
# Module forward (minus nms_3D).                                               #
# --------------------------------------------------------------------------- #
def detection_postprocess(cls, shape, offset, *, crop_size=(64, 96, 96),
                          topk=60, threshold=0.15):
    B, _, D, H, W = cls.shape
    N = D * H * W
    K = topk

    # Top-k on RAW logits (monotone sigmoid -> identical selection); logits are
    # streamed in their source dtype and cast per block inside the kernel.
    logits = cls.reshape(B, N)
    use_hier = _select_topk_impl() == "hier"
    topk_logit, topk_idx = _topk_pallas(logits, K, hier=use_hier)
    topk_score = jax.nn.sigmoid(topk_logit)          # sigmoid on K values only

    # Anchor coordinates for the K selected voxels only (n = z*H*W + y*W + x).
    safe_idx = jnp.clip(topk_idx, 0, N - 1)
    z = (safe_idx // (H * W)).astype(jnp.float32)
    y = ((safe_idx // W) % H).astype(jnp.float32)
    x = (safe_idx % W).astype(jnp.float32)
    anchors = jnp.stack([z, y, x], axis=-1)                               # (B,K,3)
    strides = jnp.array([crop_size[0] / D, crop_size[1] / H,
                         crop_size[2] / W], jnp.float32)

    # O(B*K) gather of offset/shape at the winners (source dtype), cast after.
    gidx = jnp.broadcast_to(safe_idx[:, None, :], (B, 3, K))
    off_k = jnp.take_along_axis(offset.reshape(B, 3, N), gidx, axis=2)
    shp_k = jnp.take_along_axis(shape.reshape(B, 3, N), gidx, axis=2)
    off_k = jnp.transpose(off_k, (0, 2, 1)).astype(jnp.float32)            # (B,K,3)
    shp_k = jnp.transpose(shp_k, (0, 2, 1)).astype(jnp.float32)

    c_zyx = (anchors + off_k) * strides
    bbox = jnp.concatenate([c_zyx, 2.0 * shp_k], axis=-1)                  # (B,K,6)

    # det rows: [flag, score, cz, cy, cx, dz, dy, dx]; below threshold -> -1 fill.
    keep = topk_score > threshold
    flag = jnp.where(keep, 1.0, -1.0)
    score = jnp.where(keep, topk_score, -1.0)
    box = jnp.where(keep[..., None], bbox, -1.0)
    dets = jnp.concatenate([flag[..., None], score[..., None], box], axis=-1)
    return dets


# --------------------------------------------------------------------------- #
# Pure-JAX reference (module forward minus nms_3D).                            #
# --------------------------------------------------------------------------- #
def _reference_dets(cls, shp, off, crop_size, topk, threshold):
    B, _, D, H, W = cls.shape
    N = D * H * W
    scores = jax.nn.sigmoid(cls.reshape(B, N).astype(jnp.float32))
    ts, ti = jax.lax.top_k(scores, topk)
    zz, yy, xx = jnp.meshgrid(jnp.arange(D, dtype=jnp.float32),
                              jnp.arange(H, dtype=jnp.float32),
                              jnp.arange(W, dtype=jnp.float32), indexing="ij")
    anchors = jnp.stack([zz.ravel(), yy.ravel(), xx.ravel()], axis=-1)     # (N,3)
    strides = jnp.array([crop_size[0] / D, crop_size[1] / H,
                         crop_size[2] / W], jnp.float32)
    offp = off.reshape(B, 3, N).astype(jnp.float32).transpose(0, 2, 1)
    shpp = shp.reshape(B, 3, N).astype(jnp.float32).transpose(0, 2, 1)
    bboxes = jnp.concatenate([(anchors[None] + offp) * strides, 2.0 * shpp],
                             axis=-1)                                      # (B,N,6)
    g = jnp.take_along_axis(bboxes, ti[..., None], axis=1)                 # (B,K,6)
    keep = ts > threshold
    flag = jnp.where(keep, 1.0, -1.0)
    sc = jnp.where(keep, ts, -1.0)
    bx = jnp.where(keep[..., None], g, -1.0)
    return jnp.concatenate([flag[..., None], sc[..., None], bx], axis=-1)


if __name__ == "__main__":
    key = jax.random.PRNGKey(0)
    kc, ks, ko = jax.random.split(key, 3)
    B, D, H, W = 2, 8, 8, 8
    cls = jax.random.normal(kc, (B, 1, D, H, W), jnp.float32)
    shp = jax.random.normal(ks, (B, 3, D, H, W), jnp.float32)
    off = jax.random.normal(ko, (B, 3, D, H, W), jnp.float32)

    dets = detection_postprocess(cls, shp, off, crop_size=(64, 96, 96),
                                 topk=60, threshold=0.15)
    dets = jax.block_until_ready(dets)
    assert dets.shape == (B, 60, 8) and dets.dtype == jnp.float32

    ref = jax.block_until_ready(
        _reference_dets(cls, shp, off, (64, 96, 96), 60, 0.15))
    assert jnp.allclose(dets, ref, atol=1e-5), float(jnp.max(jnp.abs(dets - ref)))
    print("KERNEL_OK")
</pallas_src>

<mosaic_0001>
module attributes {stable_mosaic.version = 11 : i64} {
  func.func @_topk_kernel_safe(%arg0: i32, %arg1: memref<1x4x128xf32, #tpu.memory_space<vmem>>, %arg2: memref<1x1x128xf32, #tpu.memory_space<vmem>>, %arg3: memref<1x1x128xi32, #tpu.memory_space<vmem>>) attributes {dimension_semantics = [#tpu.dimension_semantics<parallel>], iteration_bounds = array<i64: 2>, scalar_prefetch = 0 : i64, scratch_operands = 0 : i64, tpu.core_type = #tpu.core_type<tc>, window_params = [{transform_indices = @transform_0, window_bounds = array<i64: 1, 4, 128>}, {transform_indices = @transform_1, window_bounds = array<i64: 1, 1, 128>}, {transform_indices = @transform_2, window_bounds = array<i64: 1, 1, 128>}]} {
    %c0 = arith.constant 0 : index
    %c0_0 = arith.constant 0 : index
    %c0_1 = arith.constant 0 : index
    %0 = vector.load %arg1[%c0, %c0_0, %c0_1] : memref<1x4x128xf32, #tpu.memory_space<vmem>>, vector<1x4x128xf32>
    %1 = vector.shape_cast %0 : vector<1x4x128xf32> to vector<4x128xf32>
    %2 = tpu.iota {dimensions = array<i32: 0>} : vector<4x128xi32>
    %3 = tpu.iota {dimensions = array<i32: 1>} : vector<1x128xi32>
    %cst = arith.constant dense<0xFF800000> : vector<128xf32>
    %4 = vector.multi_reduction <maximumf>, %1, %cst [0] : vector<4x128xf32> to vector<128xf32>
    %5 = vector.shape_cast %4 : vector<128xf32> to vector<1x128xf32>
    %6 = vector.broadcast %5 : vector<1x128xf32> to vector<4x128xf32>
    %7 = arith.cmpf oeq, %1, %6 : vector<4x128xf32>
    %c1073741824_i32 = arith.constant 1073741824 : i32
    %8 = vector.broadcast %c1073741824_i32 : i32 to vector<4x128xi32>
    %9 = arith.select %7, %2, %8 : vector<4x128xi1>, vector<4x128xi32>
    %cst_2 = arith.constant dense<2147483647> : vector<128xi32>
    %10 = vector.multi_reduction <minsi>, %9, %cst_2 [0] : vector<4x128xi32> to vector<128xi32>
    %11 = vector.shape_cast %10 : vector<128xi32> to vector<1x128xi32>
    %cst_3 = arith.constant -1.000000e+30 : f32
    %12 = vector.broadcast %cst_3 : f32 to vector<1x128xf32>
    %c0_i32 = arith.constant 0 : i32
    %13 = vector.broadcast %c0_i32 : i32 to vector<1x128xi32>
    %c1073741824_i32_4 = arith.constant 1073741824 : i32
    %c0_i32_5 = arith.constant 0 : i32
    %c60_i32 = arith.constant 60 : i32
    %14 = arith.addi %c0_i32_5, %c60_i32 : i32
    %c1_i32 = arith.constant 1 : i32
    %15:4 = scf.for %arg4 = %c0_i32_5 to %14 step %c1_i32 iter_args(%arg5 = %5, %arg6 = %11, %arg7 = %12, %arg8 = %13) -> (vector<1x128xf32>, vector<1x128xi32>, vector<1x128xf32>, vector<1x128xi32>)  : i32 {
      %22 = vector.shape_cast %arg5 : vector<1x128xf32> to vector<1x1x128xf32>
      %cst_13 = arith.constant dense<0xFF800000> : vector<1xf32>
      %23 = vector.multi_reduction <maximumf>, %22, %cst_13 [1, 2] : vector<1x1x128xf32> to vector<1xf32>
      %24 = vector.shape_cast %23 : vector<1xf32> to vector<1x1x1xf32>
      %25 = vector.extract %24[0, 0, 0] : f32 from vector<1x1x1xf32>
      %c128_i32 = arith.constant 128 : i32
      %26 = vector.broadcast %c128_i32 : i32 to vector<1x128xi32>
      %27 = arith.muli %arg6, %26 : vector<1x128xi32>
      %28 = arith.addi %27, %3 : vector<1x128xi32>
      %29 = vector.broadcast %25 : f32 to vector<1x128xf32>
      %30 = arith.cmpf oeq, %arg5, %29 : vector<1x128xf32>
      %31 = vector.broadcast %c1073741824_i32_4 : i32 to vector<1x128xi32>
      %32 = arith.select %30, %28, %31 : vector<1x128xi1>, vector<1x128xi32>
      %33 = vector.shape_cast %32 : vector<1x128xi32> to vector<1x1x128xi32>
      %cst_14 = arith.constant dense<2147483647> : vector<1xi32>
      %34 = vector.multi_reduction <minsi>, %33, %cst_14 [1, 2] : vector<1x1x128xi32> to vector<1xi32>
      %35 = vector.shape_cast %34 : vector<1xi32> to vector<1x1x1xi32>
      %36 = vector.extract %35[0, 0, 0] : i32 from vector<1x1x1xi32>
      %37 = vector.broadcast %36 : i32 to vector<1x128xi32>
      %38 = arith.cmpi eq, %28, %37 : vector<1x128xi32>
      %39 = vector.broadcast %c1073741824_i32_4 : i32 to vector<1x128xi32>
      %40 = arith.select %38, %arg6, %39 : vector<1x128xi1>, vector<1x128xi32>
      %41 = vector.shape_cast %40 : vector<1x128xi32> to vector<1x1x128xi32>
      %cst_15 = arith.constant dense<2147483647> : vector<1xi32>
      %42 = vector.multi_reduction <minsi>, %41, %cst_15 [1, 2] : vector<1x1x128xi32> to vector<1xi32>
      %43 = vector.shape_cast %42 : vector<1xi32> to vector<1x1x1xi32>
      %44 = vector.extract %43[0, 0, 0] : i32 from vector<1x1x1xi32>
      %45 = vector.broadcast %arg4 : i32 to vector<1x128xi32>
      %46 = arith.cmpi eq, %3, %45 : vector<1x128xi32>
      %47 = vector.broadcast %25 : f32 to vector<1x128xf32>
      %48 = arith.select %46, %47, %arg7 : vector<1x128xi1>, vector<1x128xf32>
      %49 = vector.broadcast %arg4 : i32 to vector<1x128xi32>
      %50 = arith.cmpi eq, %3, %49 : vector<1x128xi32>
      %51 = vector.broadcast %36 : i32 to vector<1x128xi32>
      %52 = arith.select %50, %51, %arg8 : vector<1x128xi1>, vector<1x128xi32>
      %53 = vector.broadcast %25 : f32 to vector<4x128xf32>
      %54 = arith.cmpf olt, %1, %53 : vector<4x128xf32>
      %55 = vector.broadcast %25 : f32 to vector<4x128xf32>
      %56 = arith.cmpf oeq, %1, %55 : vector<4x128xf32>
      %57 = vector.broadcast %44 : i32 to vector<4x128xi32>
      %58 = arith.cmpi sgt, %2, %57 : vector<4x128xi32>
      %59 = arith.andi %56, %58 : vector<4x128xi1>
      %60 = arith.ori %54, %59 : vector<4x128xi1>
      %61 = vector.broadcast %38 : vector<1x128xi1> to vector<4x128xi1>
      %62 = arith.andi %61, %60 : vector<4x128xi1>
      %cst_16 = arith.constant 0xFF800000 : f32
      %63 = vector.broadcast %cst_16 : f32 to vector<4x128xf32>
      %64 = arith.select %62, %1, %63 : vector<4x128xi1>, vector<4x128xf32>
      %65 = vector.shape_cast %64 : vector<4x128xf32> to vector<1x4x128xf32>
      %cst_17 = arith.constant dense<0xFF800000> : vector<1xf32>
      %66 = vector.multi_reduction <maximumf>, %65, %cst_17 [1, 2] : vector<1x4x128xf32> to vector<1xf32>
      %67 = vector.shape_cast %66 : vector<1xf32> to vector<1x1x1xf32>
      %68 = vector.extract %67[0, 0, 0] : f32 from vector<1x1x1xf32>
      %69 = vector.broadcast %68 : f32 to vector<4x128xf32>
      %70 = arith.cmpf oeq, %64, %69 : vector<4x128xf32>
      %71 = vector.broadcast %c1073741824_i32_4 : i32 to vector<4x128xi32>
      %72 = arith.select %70, %2, %71 : vector<4x128xi1>, vector<4x128xi32>
      %73 = vector.shape_cast %72 : vector<4x128xi32> to vector<1x4x128xi32>
      %cst_18 = arith.constant dense<2147483647> : vector<1xi32>
      %74 = vector.multi_reduction <minsi>, %73, %cst_18 [1, 2] : vector<1x4x128xi32> to vector<1xi32>
      %75 = vector.shape_cast %74 : vector<1xi32> to vector<1x1x1xi32>
      %76 = vector.extract %75[0, 0, 0] : i32 from vector<1x1x1xi32>
      %77 = vector.broadcast %68 : f32 to vector<1x128xf32>
      %78 = arith.select %38, %77, %arg5 : vector<1x128xi1>, vector<1x128xf32>
      %79 = vector.broadcast %76 : i32 to vector<1x128xi32>
      %80 = arith.select %38, %79, %arg6 : vector<1x128xi1>, vector<1x128xi32>
      scf.yield %78, %80, %48, %52 : vector<1x128xf32>, vector<1x128xi32>, vector<1x128xf32>, vector<1x128xi32>
    }
    %c60_i32_6 = arith.constant 60 : i32
    %c0_7 = arith.constant 0 : index
    %c0_8 = arith.constant 0 : index
    %c0_9 = arith.constant 0 : index
    %16 = vector.load %arg2[%c0_7, %c0_8, %c0_9] : memref<1x1x128xf32, #tpu.memory_space<vmem>>, vector<1x1x128xf32>
    %17 = vector.shape_cast %16 : vector<1x1x128xf32> to vector<1x128xf32>
    %18 = vector.shape_cast %15#2 : vector<1x128xf32> to vector<1x1x128xf32>
    tpu.vector_store %arg2[%c0_7, %c0_8, %c0_9], %18 {strides = array<i32>} : memref<1x1x128xf32, #tpu.memory_space<vmem>>, vector<1x1x128xf32>,
    %c0_10 = arith.constant 0 : index
    %c0_11 = arith.constant 0 : index
    %c0_12 = arith.constant 0 : index
    %19 = vector.load %arg3[%c0_10, %c0_11, %c0_12] : memref<1x1x128xi32, #tpu.memory_space<vmem>>, vector<1x1x128xi32>
    %20 = vector.shape_cast %19 : vector<1x1x128xi32> to vector<1x128xi32>
    %21 = vector.shape_cast %15#3 : vector<1x128xi32> to vector<1x1x128xi32>
    tpu.vector_store %arg3[%c0_10, %c0_11, %c0_12], %21 {strides = array<i32>} : memref<1x1x128xi32, #tpu.memory_space<vmem>>, vector<1x1x128xi32>,
    return
  }
  func.func @transform_0(%arg0: i32) -> (i32, i32, i32) {
    %c0_i32 = arith.constant 0 : i32
    %c0_i32_0 = arith.constant 0 : i32
    %c0_i32_1 = arith.constant 0 : i32
    return %arg0, %c0_i32, %c0_i32_0 : i32, i32, i32
  }
  func.func @transform_1(%arg0: i32) -> (i32, i32, i32) {
    %c0_i32 = arith.constant 0 : i32
    %c0_i32_0 = arith.constant 0 : i32
    %c0_i32_1 = arith.constant 0 : i32
    return %arg0, %c0_i32, %c0_i32_0 : i32, i32, i32
  }
  func.func @transform_2(%arg0: i32) -> (i32, i32, i32) {
    %c0_i32 = arith.constant 0 : i32
    %c0_i32_0 = arith.constant 0 : i32
    %c0_i32_1 = arith.constant 0 : i32
    return %arg0, %c0_i32, %c0_i32_0 : i32, i32, i32
  }
}

</mosaic_0001>

<llo_original>
// kernel: tpu_custom_call.1
$region0: #{tpu_custom_call.1}
  #allocation0 [shape = 'u32[]', space=smem, size = 0x4, offset = 0x4, fixed_abs, tag = 'smem constant byte address 0x4 - core index']
  #allocation1 [shape = 'u32[144,128]{1,0:T(1,128)}', space=vmem, size = 0x12000, scoped, tag = 'internal scratch']
  %s0 = inlined_call_operand.hbm [shape: f32[2,4,128], index: 0, kind: input, shape index: {}]
  %s1 = inlined_call_operand.hbm [shape: f32[2,1,128], index: 1, kind: output, shape index: {0}]
  %s2 = inlined_call_operand.hbm [shape: s32[2,1,128], index: 2, kind: output, shape index: {1}]
  %3 = xla_tuple %s1, %s2
  %s4 = sld [smem:[#allocation0]]
  $region56: #{tpu_custom_call.1} parent=0
    _
  %s6 = ssub.s32 1, %s4
  %s7 = scalar_select 0, %s6, %s4
  $region1: #{tpu_custom_call.1} parent=0
    #allocation2 [shape = 'u8[4096]{0}', space=vmem, size = 0x1000, scoped, tag = 'input window, operand 0']
    #allocation3 [shape = 's32[2]{0}', space=sflag, size = 0x8, scoped, tag = 'scoped memory for tpu_custom_call.1']
    #allocation4 [shape = 's32[2]{0}', space=sflag, size = 0x8, scoped, tag = 'scoped memory for tpu_custom_call.1']
    #allocation5 [shape = 'u8[1024]{0}', space=vmem, size = 0x400, scoped, tag = 'output window, operand 0']
    #allocation6 [shape = 'u8[1024]{0}', space=vmem, size = 0x400, scoped, tag = 'output window, operand 1']
    #allocation7 [shape = 's32[2]{0}', space=sflag, size = 0x8, scoped, tag = 'scoped memory for tpu_custom_call.1']
    %8 = vsyncpa [#allocation3], 0
    %s9 = scalar_lea.sflag [#allocation3], 1
    %10 = vsyncpa %s9, 0
    %11 = vsyncpa [#allocation4], 0
    %s12 = scalar_lea.sflag [#allocation4], 1
    %13 = vsyncpa %s12, 0
    %14 = vsyncpa [#allocation7], 0
    %s15 = scalar_lea.sflag [#allocation7], 1
    %16 = vsyncpa %s15, 0
    loop: start=0, step=1, limit=4
    $region2: #{tpu_custom_call.1} parent=1 // loop_pre_header
      _
    $region3: #{tpu_custom_call.1} parent=1 // loop_header
      %s18 = sphi 0, %s22
      %p19 = scmp.ge.s32.totalorder %s18, 4
      %s28 = sphi 0, %s30
      %s31 = sphi 0, %s28
      %s32 = sphi 0, %s31
      %s48 = sphi 0, %s32
      %s54 = sphi 0, %s56
      %s57 = sphi 0, %s54
      %s58 = sphi 0, %s57
      %s74 = sphi 0, %s58
      %s80 = sphi 0, %s82
      %s83 = sphi 0, %s80
      %s84 = sphi 0, %s83
      %s100 = sphi 0, %s84
    $region4: #{tpu_custom_call.1} parent=1 // loop_header_branch
      %21 = sbr.rel (%p19) target = $region8
    $region5: #{tpu_custom_call.1} parent=1 // loop_body
      %s23 = ssub.s32 %s18, 1
      %s24 = ssub.s32 %s18, 2
      %s25 = sadd.s32 %s18, 1
      %s26 = ssub.s32 %s18, %s25
      %p27 = scmp.eq.s32.totalorder %s26, 0
      %s29 = sadd.s32 %s28, 1
      %s30 = scalar_select %p27, %s28, %s29
      %p33 = pneg %p27
      %p34 = scmp.eq.s32.totalorder %s18, 1
      %p35 = por %p33, %p34
      %p36 = scmp.ne.s32.totalorder %s28, %s31
      %p37 = scmp.eq.s32.totalorder %s18, 0
      %p38 = por %p36, %p37
      %p39 = scmp.ne.s32.totalorder %s28, %s31
      %p40 = scmp.eq.s32.totalorder %s23, 1
      %p41 = por %p39, %p40
      %p42 = scmp.ne.s32.totalorder %s31, %s32
      %p43 = scmp.eq.s32.totalorder %s23, 0
      %p44 = por %p42, %p43
      %p45 = scmp.ne.s32.totalorder %s31, %s32
      %p46 = scmp.eq.s32.totalorder %s24, 1
      %p47 = por %p45, %p46
      %p49 = scmp.ne.s32.totalorder %s32, %s48
      %p50 = scmp.eq.s32.totalorder %s24, 0
      %p51 = por %p49, %p50
      %s52 = ssub.s32 %s18, %s25
      %p53 = scmp.eq.s32.totalorder %s52, 0
      %s55 = sadd.s32 %s54, 1
      %s56 = scalar_select %p53, %s54, %s55
      %p59 = pneg %p53
      %p60 = scmp.eq.s32.totalorder %s18, 1
      %p61 = por %p59, %p60
      %p62 = scmp.ne.s32.totalorder %s54, %s57
      %p63 = scmp.eq.s32.totalorder %s18, 0
      %p64 = por %p62, %p63
      %p65 = scmp.ne.s32.totalorder %s54, %s57
      %p66 = scmp.eq.s32.totalorder %s23, 1
      %p67 = por %p65, %p66
      %p68 = scmp.ne.s32.totalorder %s57, %s58
      %p69 = scmp.eq.s32.totalorder %s23, 0
      %p70 = por %p68, %p69
      %p71 = scmp.ne.s32.totalorder %s57, %s58
      %p72 = scmp.eq.s32.totalorder %s24, 1
      %p73 = por %p71, %p72
      %p75 = scmp.ne.s32.totalorder %s58, %s74
      %p76 = scmp.eq.s32.totalorder %s24, 0
      %p77 = por %p75, %p76
      %s78 = ssub.s32 %s18, %s25
      %p79 = scmp.eq.s32.totalorder %s78, 0
      %s81 = sadd.s32 %s80, 1
      %s82 = scalar_select %p79, %s80, %s81
      %p85 = pneg %p79
      %p86 = scmp.eq.s32.totalorder %s18, 1
      %p87 = por %p85, %p86
      %p88 = scmp.ne.s32.totalorder %s80, %s83
      %p89 = scmp.eq.s32.totalorder %s18, 0
      %p90 = por %p88, %p89
      %p91 = scmp.ne.s32.totalorder %s80, %s83
      %p92 = scmp.eq.s32.totalorder %s23, 1
      %p93 = por %p91, %p92
      %p94 = scmp.ne.s32.totalorder %s83, %s84
      %p95 = scmp.eq.s32.totalorder %s23, 0
      %p96 = por %p94, %p95
      %p97 = scmp.ne.s32.totalorder %s83, %s84
      %p98 = scmp.eq.s32.totalorder %s24, 1
      %p99 = por %p97, %p98
      %p101 = scmp.ne.s32.totalorder %s84, %s100
      %p102 = scmp.eq.s32.totalorder %s24, 0
      %p103 = por %p101, %p102
      %p104 = scmp.le.s32.totalorder 1, %s18
      %p105 = scmp.lt.s32.totalorder %s18, 3
      %p106 = pnand %p104, %p105
      %p107 = pneg %p106
      // Predicated region
      $region9: #{tpu_custom_call.1} parent=5 // pred_check
        _
      $region10: #{tpu_custom_call.1} parent=5 // pred_check_branch
        %109 = sbr.rel (%p106) target = $region12
      $region11: #{tpu_custom_call.1} parent=5 // pred_region
        %s110 = ssub.s32 %s18, 1
      $region12: #{tpu_custom_call.1} parent=5 // pred_fallthru
        _
      %p111 = scmp.lt.s32.totalorder %s18, 2
      // Predicated region
      $region13: #{tpu_custom_call.1} parent=5 // pred_check
        %p112 = pneg %p111
      $region14: #{tpu_custom_call.1} parent=5 // pred_check_branch
        %114 = sbr.rel (%p112) target = $region16
      $region15: #{tpu_custom_call.1} parent=5 // pred_region
        // Predicated region
        $region17: #{tpu_custom_call.1} parent=15 // pred_check
          %p115 = pneg %p38
        $region18: #{tpu_custom_call.1} parent=15 // pred_check_branch
          %117 = sbr.rel (%p115) target = $region20
        $region19: #{tpu_custom_call.1} parent=15 // pred_region
          %s118 = sand.u32 %s28, 1
          %s119 = scalar_lea.sflag [#allocation3], %s118
          %s120 = sand.u32 %s28, 1
          %s121 = smul.addr %s120, 4
          %s122 = scalar_lea.vmem [#allocation2], %s121
          %s124 = ssub.s32 64, 64
          %125 = vsyncadd %s119, %s124
          %s126 = smul.addr %s18, 64
          %s127 = scalar_lea.hbm %s0, %s126
          %s129 = sshll.u32 %s122, 4
          %s130 = int_to_ptr.vmem [resolvable:$true] %s129
          %132 = dma.hbm_to_vmem [thread:$0]  %s127, 64, %s130, %s119
        $region20: #{tpu_custom_call.1} parent=15 // pred_fallthru
          _
      $region16: #{tpu_custom_call.1} parent=5 // pred_fallthru
        _
      %p133 = scmp.le.s32.totalorder 1, %s18
      %p134 = scmp.lt.s32.totalorder %s18, 3
      %p135 = pnand %p133, %p134
      %p136 = pneg %p135
      // Predicated region
      $region21: #{tpu_custom_call.1} parent=5 // pred_check
        _
      $region22: #{tpu_custom_call.1} parent=5 // pred_check_branch
        %138 = sbr.rel (%p135) target = $region24
      $region23: #{tpu_custom_call.1} parent=5 // pred_region
        %s139 = ssub.s32 %s18, 1
        %s140 = sand.u32 %s31, 1
        %s141 = scalar_lea.sflag [#allocation3], %s140
        %s142 = sand.u32 %s31, 1
        %s143 = smul.addr %s142, 4
        %s144 = scalar_lea.vmem [#allocation2], %s143
        // Predicated region
        $region25: #{tpu_custom_call.1} parent=23 // pred_check
          %p145 = pneg %p44
        $region26: #{tpu_custom_call.1} parent=23 // pred_check_branch
          %147 = sbr.rel (%p145) target = $region28
        $region27: #{tpu_custom_call.1} parent=23 // pred_region
          %148 = dma.done %s141, 64
        $region28: #{tpu_custom_call.1} parent=23 // pred_fallthru
          _
        %s149 = sand.u32 %s31, 1
        %s150 = scalar_lea.sflag [#allocation3], %s149
        %s151 = sand.u32 %s31, 1
        %s152 = smul.addr %s151, 4
        %s153 = scalar_lea.vmem [#allocation2], %s152
        %p154 = pneg %p44
        %p155 = pneg %p41
        %p156 = pneg %p70
        %p157 = pneg %p67
        %s158 = sand.u32 %s57, 1
        %s159 = scalar_lea.sflag [#allocation4], %s158
        %s160 = sand.u32 %s57, 1
        %s161 = scalar_lea.vmem [#allocation5], %s160
        %p162 = pneg %p96
        %p163 = pneg %p93
        %s164 = sand.u32 %s83, 1
        %s165 = scalar_lea.sflag [#allocation7], %s164
        %s166 = sand.u32 %s83, 1
        %s167 = scalar_lea.vmem [#allocation6], %s166
        %v168 = vld [vmem:[%s144] sm:$0xf]
        %v169 = vlaneseq
        %v170 = vshrl.u32 %v169, 7
        %v171 = vlaneseq
        %v172 = vand.u32 %v171, 127
        %vm173 = vcmask 1043456
        %v174 = vsel %vm173, %v168, -inf
        %v175 = vrot.slane %v174, 4
        %v176 = vmax.f32 %v174, %v175
        %v177 = vrot.slane %v176, 2
        %v178 = vmax.f32 %v176, %v177
        %v179 = vrot.slane %v178, 1
        %v180 = vmax.f32 %v178, %v179
        %vm181 = vcmp.eq.f32.partialorder %v168, %v180
        %v182 = vsel %vm181, %v170, 1073741824
        %v183 = vsel %vm173, %v182, 2147483647
        %v184 = vrot.slane %v183, 4
        %vm185 = vcmp.lt.s32.totalorder %v183, %v184
        %v186 = vsel %vm185, %v183, %v184
        %v187 = vrot.slane %v186, 2
        %vm188 = vcmp.lt.s32.totalorder %v186, %v187
        %v189 = vsel %vm188, %v186, %v187
        %v190 = vrot.slane %v189, 1
        %vm191 = vcmp.lt.s32.totalorder %v189, %v190
        %v192 = vsel %vm191, %v189, %v190
        loop: start=0, step=1, limit=60
        $region29: #{tpu_custom_call.1} parent=23 // loop_pre_header
          _
        $region30: #{tpu_custom_call.1} parent=23 // loop_header
          %s194 = sphi 0, %s198
          %p195 = scmp.ge.s32.totalorder %s194, 60
          %v199 = vphi %v180, %v296
          %v200 = vphi %v192, %v298
          %v201 = vphi -1e+30, %v246
          %v202 = vphi 0, %v247
        $region31: #{tpu_custom_call.1} parent=23 // loop_header_branch
          %197 = sbr.rel (%p195) target = $region35
        $region32: #{tpu_custom_call.1} parent=23 // loop_body
          %203 = vmax.xlane.f32.xlu0 %v199
          %v204 = vpop.xlane.xlu0 %203
          %s205 = vtos %v204
          %v206 = vmul.u32 %v200, 128
          %v207 = vadd.s32 %v206, %v172
          %v208 = vstv %s205
          %vm209 = vcmp.eq.f32.partialorder %v199, %v208
          %v210 = vsel %vm209, %v207, 1073741824
          %v211 = vand.u32 %v210, 65535
          %v212 = vshra.s32 %v210, 16
          %v213 = vcvt.s32.f32 %v211
          %v214 = vcvt.s32.f32 %v212
          %215 = vmin.xlane.f32.xlu0 %v214
          %v216 = vpop.xlane.xlu0 %215
          %vm217 = vcmp.eq.f32.partialorder %v214, %v216
          %v218 = vsel %vm217, %v213, inf
          %219 = vmin.xlane.f32.xlu0 %v218
          %v220 = vpop.xlane.xlu0 %219
          %v221 = vcvt.f32.s32 %v220
          %v222 = vcvt.f32.s32 %v216
          %v223 = vshll.u32 %v222, 16
          %v224 = vadd.s32 %v223, %v221
          %s225 = vtos %v224
          %v226 = vstv %s225
          %vm227 = vcmp.eq.s32.totalorder %v207, %v226
          %v228 = vsel %vm227, %v200, 1073741824
          %v229 = vand.u32 %v228, 65535
          %v230 = vshra.s32 %v228, 16
          %v231 = vcvt.s32.f32 %v229
          %v232 = vcvt.s32.f32 %v230
          %233 = vmin.xlane.f32.xlu0 %v232
          %v234 = vpop.xlane.xlu0 %233
          %vm235 = vcmp.eq.f32.partialorder %v232, %v234
          %v236 = vsel %vm235, %v231, inf
          %237 = vmin.xlane.f32.xlu0 %v236
          %v238 = vpop.xlane.xlu0 %237
          %v239 = vcvt.f32.s32 %v238
          %v240 = vcvt.f32.s32 %v234
          %v241 = vshll.u32 %v240, 16
          %v242 = vadd.s32 %v241, %v239
          %s243 = vtos %v242
          %v244 = vstv %s194
          %vm245 = vcmp.eq.s32.totalorder %v172, %v244
          %v246 = vsel %vm245, %v208, %v201
          %v247 = vsel %vm245, %v226, %v202
          %vm248 = vcmp.lt.f32.partialorder %v168, %v208
          %vm249 = vcmp.eq.f32.partialorder %v168, %v208
          %v250 = vstv %s243
          %vm251 = vcmp.gt.s32.totalorder %v170, %v250
          %vm252 = vmand %vm249, %vm251
          %vm253 = vmor %vm248, %vm252
          %v254 = vsel %vm227, 1, 0
          %vm255 = vcmp.eq.s32.totalorder %v254, 1
          %vm256 = vmand %vm255, %vm253
          %v257 = vsel %vm256, %v168, -inf
          %v258 = vsel %vm173, %v257, -inf
          %259 = vmax.xlane.f32.xlu0 %v258
          %v260 = vpop.xlane.xlu0 %259
          %v261 = vrot.slane %v260, 4
          %v262 = vmax.f32 %v260, %v261
          %v263 = vrot.slane %v262, 2
          %v264 = vmax.f32 %v262, %v263
          %v265 = vrot.slane %v264, 1
          %v266 = vmax.f32 %v264, %v265
          %s267 = vtos %v266
          %v268 = vstv %s267
          %vm269 = vcmp.eq.f32.partialorder %v257, %v268
          %v270 = vsel %vm269, %v170, 1073741824
          %v271 = vsel %vm173, %v270, 2147483647
          %v272 = vand.u32 %v271, 65535
          %v273 = vshra.s32 %v271, 16
          %v274 = vcvt.s32.f32 %v272
          %v275 = vcvt.s32.f32 %v273
          %276 = vmin.xlane.f32.xlu0 %v275
          %v277 = vpop.xlane.xlu0 %276
          %vm278 = vcmp.eq.f32.partialorder %v275, %v277
          %v279 = vsel %vm278, %v274, inf
          %280 = vmin.xlane.f32.xlu0 %v279
          %v281 = vpop.xlane.xlu0 %280
          %v282 = vcvt.f32.s32 %v281
          %v283 = vcvt.f32.s32 %v277
          %v284 = vshll.u32 %v283, 16
          %v285 = vadd.s32 %v284, %v282
          %v286 = vrot.slane %v285, 4
          %vm287 = vcmp.lt.s32.totalorder %v285, %v286
          %v288 = vsel %vm287, %v285, %v286
          %v289 = vrot.slane %v288, 2
          %vm290 = vcmp.lt.s32.totalorder %v288, %v289
          %v291 = vsel %vm290, %v288, %v289
          %v292 = vrot.slane %v291, 1
          %vm293 = vcmp.lt.s32.totalorder %v291, %v292
          %v294 = vsel %vm293, %v291, %v292
          %s295 = vtos %v294
          %v296 = vsel %vm227, %v268, %v199
          %v297 = vstv %s295
          %v298 = vsel %vm227, %v297, %v200
        $region33: #{tpu_custom_call.1} parent=23 // loop_footer
          %s198 = sadd.s32 1, %s194
        $region34: #{tpu_custom_call.1} parent=23 // loop_footer_branch
          %193 = sbr.rel target = $region30
        $region35: #{tpu_custom_call.1} parent=23 // loop_exit
          _
        %299 = vst [vmem:[%s161] sm:$0x1] %v201
        %300 = vst [vmem:[%s167] sm:$0x1] %v202
        %s301 = sand.u32 %s57, 1
        %s302 = scalar_lea.sflag [#allocation4], %s301
        %s303 = sand.u32 %s57, 1
        %s304 = scalar_lea.vmem [#allocation5], %s303
        %s305 = sand.u32 %s83, 1
        %s306 = scalar_lea.sflag [#allocation7], %s305
        %s307 = sand.u32 %s83, 1
        %s308 = scalar_lea.vmem [#allocation6], %s307
        // Predicated region
        $region36: #{tpu_custom_call.1} parent=23 // pred_check
          %p309 = pneg %p67
        $region37: #{tpu_custom_call.1} parent=23 // pred_check_branch
          %311 = sbr.rel (%p309) target = $region39
        $region38: #{tpu_custom_call.1} parent=23 // pred_region
          %s313 = ssub.s32 16, 16
          %314 = vsyncadd %s302, %s313
          %s315 = smul.addr %s23, 16
          %s316 = scalar_lea.hbm %s1, %s315
          %s318 = sshll.u32 %s304, 4
          %s319 = int_to_ptr.vmem [resolvable:$true] %s318
          %321 = dma.vmem_to_hbm [thread:$0]  %s319, 16, %s316, %s302
        $region39: #{tpu_custom_call.1} parent=23 // pred_fallthru
          _
        // Predicated region
        $region40: #{tpu_custom_call.1} parent=23 // pred_check
          %p322 = pneg %p93
        $region41: #{tpu_custom_call.1} parent=23 // pred_check_branch
          %324 = sbr.rel (%p322) target = $region43
        $region42: #{tpu_custom_call.1} parent=23 // pred_region
          %s326 = ssub.s32 16, 16
          %327 = vsyncadd %s306, %s326
          %s328 = smul.addr %s23, 16
          %s329 = scalar_lea.hbm %s2, %s328
          %s331 = sshll.u32 %s308, 4
          %s332 = int_to_ptr.vmem [resolvable:$true] %s331
          %334 = dma.vmem_to_hbm [thread:$0]  %s332, 16, %s329, %s306
        $region43: #{tpu_custom_call.1} parent=23 // pred_fallthru
          _
      $region24: #{tpu_custom_call.1} parent=5 // pred_fallthru
        _
      %p335 = scmp.le.s32.totalorder 2, %s18
      // Predicated region
      $region44: #{tpu_custom_call.1} parent=5 // pred_check
        %p336 = pneg %p335
      $region45: #{tpu_custom_call.1} parent=5 // pred_check_branch
        %338 = sbr.rel (%p336) target = $region47
      $region46: #{tpu_custom_call.1} parent=5 // pred_region
        %s339 = ssub.s32 %s18, 2
        // Predicated region
        $region48: #{tpu_custom_call.1} parent=46 // pred_check
          %p340 = pneg %p73
        $region49: #{tpu_custom_call.1} parent=46 // pred_check_branch
          %342 = sbr.rel (%p340) target = $region51
        $region50: #{tpu_custom_call.1} parent=46 // pred_region
          %s343 = sand.u32 %s58, 1
          %s344 = scalar_lea.sflag [#allocation4], %s343
          %s345 = sand.u32 %s58, 1
          %s346 = scalar_lea.vmem [#allocation5], %s345
          %347 = dma.done %s344, 16
        $region51: #{tpu_custom_call.1} parent=46 // pred_fallthru
          _
        // Predicated region
        $region52: #{tpu_custom_call.1} parent=46 // pred_check
          %p348 = pneg %p99
        $region53: #{tpu_custom_call.1} parent=46 // pred_check_branch
          %350 = sbr.rel (%p348) target = $region55
        $region54: #{tpu_custom_call.1} parent=46 // pred_region
          %s351 = sand.u32 %s84, 1
          %s352 = scalar_lea.sflag [#allocation7], %s351
          %s353 = sand.u32 %s84, 1
          %s354 = scalar_lea.vmem [#allocation6], %s353
          %355 = dma.done %s352, 16
        $region55: #{tpu_custom_call.1} parent=46 // pred_fallthru
          _
      $region47: #{tpu_custom_call.1} parent=5 // pred_fallthru
        _
    $region6: #{tpu_custom_call.1} parent=1 // loop_footer
      %s22 = sadd.s32 1, %s18
    $region7: #{tpu_custom_call.1} parent=1 // loop_footer_branch
      %17 = sbr.rel target = $region3
    $region8: #{tpu_custom_call.1} parent=1 // loop_exit
      _
    %356 = vsyncpa [#allocation3], 1
    %s357 = scalar_lea.sflag [#allocation3], 1
    %358 = vsyncpa %s357, 1
    %359 = vsyncpa [#allocation4], 1
    %s360 = scalar_lea.sflag [#allocation4], 1
    %361 = vsyncpa %s360, 1
    %362 = vsyncpa [#allocation7], 1
    %s363 = scalar_lea.sflag [#allocation7], 1
    %364 = vsyncpa %s363, 1

</llo_original>
